<compile_context>
chip_gen: v5e
topology: v5e:2x2
jax: 0.10.0
libtpu: 0.0.40
codegen_flags: <defaults>
</compile_context>

<pallas_src>
import jax
import jax.numpy as jnp
from jax.experimental import pallas as pl
from jax.experimental.pallas import tpu as pltpu


def make_elman_kernel(T, B):
    """Kernel closure over static seq_len T and (padded) batch B."""

    def kernel(x_ref, wih_ref, whh_ref, bias_ref, h0_ref, out_ref):
        # x_ref   : (T*B, F)   time-major, flattened over (t, b)
        # wih_ref : (F, H)     W_ih^T
        # whh_ref : (H, H)     W_hh^T
        # bias_ref: (1, H)     b_ih + b_hh
        # h0_ref  : (1, H)     init_state (broadcast over batch in-kernel)
        # out_ref : (T*B, H)   per-timestep hidden states (also used as proj scratch)
        H = whh_ref.shape[1]

        # Hoisted input projection: one MXU pass over all timesteps, stored into the
        # output slab (reused as scratch for the recurrence).
        out_ref[...] = (
            jnp.dot(x_ref[...], wih_ref[...], preferred_element_type=jnp.float32)
            + bias_ref[...]
        )

        h0 = jnp.broadcast_to(h0_ref[...], (B, H))

        def step(t, h):
            r = pl.multiple_of(t * B, B)              # aligned sublane-block start
            h_new = jnp.tanh(
                out_ref[pl.ds(r, B), :]
                + jnp.dot(h, whh_ref[...], preferred_element_type=jnp.float32)
            )
            out_ref[pl.ds(r, B), :] = h_new
            return h_new

        jax.lax.fori_loop(0, T, step, h0, unroll=True)

    return kernel


def elman_rnn_forward(x, w_ih, w_hh, b_ih, b_hh, init_state):
    """
    x          : (T, B, F)  float32
    w_ih       : (H, F)     PyTorch nn.RNN weight_ih_l0
    w_hh       : (H, H)     PyTorch nn.RNN weight_hh_l0
    b_ih, b_hh : (H,)
    init_state : (1, H)     repeated over batch (repeat_init_state)
    returns (output (T,B,H), h_n (1,B,H))
    """
    T, B, F = x.shape
    H = w_hh.shape[0]

    # Pad batch to a sublane multiple (8) so every vector op / store is dense.
    pad_b = (-B) % 8
    Bp = B + pad_b
    x_p = jnp.pad(jnp.asarray(x, jnp.float32), ((0, 0), (0, pad_b), (0, 0))) if pad_b else jnp.asarray(x, jnp.float32)
    x2d = x_p.reshape(T * Bp, F)

    wih_t = jnp.asarray(w_ih, jnp.float32).T                       # (F, H)
    whh_t = jnp.asarray(w_hh, jnp.float32).T                       # (H, H)
    bias = (jnp.asarray(b_ih, jnp.float32)
            + jnp.asarray(b_hh, jnp.float32)).reshape(1, H)        # fused bias
    h0 = jnp.asarray(init_state, jnp.float32).reshape(1, H)

    bytes_accessed = 4 * (x2d.size + T * Bp * H + wih_t.size + whh_t.size
                          + bias.size + h0.size)
    cost = pl.CostEstimate(
        flops=2 * T * Bp * (F + H) * H,
        transcendentals=T * Bp * H,
        bytes_accessed=bytes_accessed,
    )

    out2d = pl.pallas_call(
        make_elman_kernel(T, Bp),
        out_shape=jax.ShapeDtypeStruct((T * Bp, H), jnp.float32),
        grid=(1,),
        in_specs=[
            pl.BlockSpec((T * Bp, F), lambda i: (0, 0)),   # x, fully resident
            pl.BlockSpec((F, H), lambda i: (0, 0)),        # W_ih^T
            pl.BlockSpec((H, H), lambda i: (0, 0)),        # W_hh^T
            pl.BlockSpec((1, H), lambda i: (0, 0)),        # fused bias
            pl.BlockSpec((1, H), lambda i: (0, 0)),        # init_state
        ],
        out_specs=pl.BlockSpec((T * Bp, H), lambda i: (0, 0)),
        compiler_params=pltpu.CompilerParams(
            dimension_semantics=("arbitrary",),            # serial recurrence
        ),
        cost_estimate=cost,
    )(x2d, wih_t, whh_t, bias, h0)

    out = out2d.reshape(T, Bp, H)[:, :B, :]                # drop batch padding
    h_n = out[-1:]                                         # (1, B, H), sliced in wrapper
    return out, h_n


def reference_rnn(x, w_ih, w_hh, b_ih, b_hh, init_state):
    """Pure-JAX reference for correctness check."""
    T, B, F = x.shape
    H = w_hh.shape[0]
    h = jnp.broadcast_to(init_state, (B, H)).astype(jnp.float32)
    outs = []
    for t in range(T):
        h = jnp.tanh(x[t] @ w_ih.T + b_ih + h @ w_hh.T + b_hh)
        outs.append(h)
    return jnp.stack(outs, 0), h[None]


if __name__ == "__main__":
    # Small, deterministic configuration consistent with the module's forward.
    seq_len = 8
    batch = 4
    n_features_U = 4
    n_state_neurons = 32

    key = jax.random.PRNGKey(0)
    k_x, k_wih, k_whh, k_bih, k_bhh, k_h0 = jax.random.split(key, 6)

    # PyTorch nn.RNN init: U(-1/sqrt(H), 1/sqrt(H)); init_state: torch.rand in [0,1).
    bound = 1.0 / (n_state_neurons ** 0.5)
    w_ih = jax.random.uniform(k_wih, (n_state_neurons, n_features_U), jnp.float32, -bound, bound)
    w_hh = jax.random.uniform(k_whh, (n_state_neurons, n_state_neurons), jnp.float32, -bound, bound)
    b_ih = jax.random.uniform(k_bih, (n_state_neurons,), jnp.float32, -bound, bound)
    b_hh = jax.random.uniform(k_bhh, (n_state_neurons,), jnp.float32, -bound, bound)
    init_state = jax.random.uniform(k_h0, (1, n_state_neurons), jnp.float32, 0.0, 1.0)

    features_past = jax.random.normal(k_x, (seq_len, batch, n_features_U), jnp.float32)

    out, h_n = elman_rnn_forward(features_past, w_ih, w_hh, b_ih, b_hh, init_state)
    jax.block_until_ready(out)
    jax.block_until_ready(h_n)

    ref_out, ref_hn = reference_rnn(features_past, w_ih, w_hh, b_ih, b_hh, init_state)
    assert out.shape == (seq_len, batch, n_state_neurons)
    assert h_n.shape == (1, batch, n_state_neurons)
    assert jnp.allclose(out, ref_out, atol=1e-5, rtol=1e-5)
    assert jnp.allclose(h_n, ref_hn, atol=1e-5, rtol=1e-5)

    print("KERNEL_OK")
</pallas_src>

<mosaic_0001>
module attributes {stable_mosaic.version = 11 : i64} {
  func.func @kernel(%arg0: i32, %arg1: memref<64x4xf32, #tpu.memory_space<vmem>>, %arg2: memref<4x32xf32, #tpu.memory_space<vmem>>, %arg3: memref<32x32xf32, #tpu.memory_space<vmem>>, %arg4: memref<1x32xf32, #tpu.memory_space<vmem>>, %arg5: memref<1x32xf32, #tpu.memory_space<vmem>>, %arg6: memref<64x32xf32, #tpu.memory_space<vmem>>) attributes {dimension_semantics = [#tpu.dimension_semantics<arbitrary>], iteration_bounds = array<i64: 1>, scalar_prefetch = 0 : i64, scratch_operands = 0 : i64, tpu.core_type = #tpu.core_type<tc>, window_params = [{pipeline_mode = #tpu.pipeline_mode<synchronous>, transform_indices = @transform_0, window_bounds = array<i64: 64, 4>}, {pipeline_mode = #tpu.pipeline_mode<synchronous>, transform_indices = @transform_1, window_bounds = array<i64: 4, 32>}, {pipeline_mode = #tpu.pipeline_mode<synchronous>, transform_indices = @transform_2, window_bounds = array<i64: 32, 32>}, {pipeline_mode = #tpu.pipeline_mode<synchronous>, transform_indices = @transform_3, window_bounds = array<i64: 1, 32>}, {pipeline_mode = #tpu.pipeline_mode<synchronous>, transform_indices = @transform_4, window_bounds = array<i64: 1, 32>}, {pipeline_mode = #tpu.pipeline_mode<synchronous>, transform_indices = @transform_5, window_bounds = array<i64: 64, 32>}]} {
    %c0 = arith.constant 0 : index
    %c0_0 = arith.constant 0 : index
    %0 = vector.load %arg1[%c0, %c0_0] : memref<64x4xf32, #tpu.memory_space<vmem>>, vector<64x4xf32>
    %c0_1 = arith.constant 0 : index
    %c0_2 = arith.constant 0 : index
    %1 = vector.load %arg2[%c0_1, %c0_2] : memref<4x32xf32, #tpu.memory_space<vmem>>, vector<4x32xf32>
    %cst = arith.constant dense<0.000000e+00> : vector<64x32xf32>
    %2 = tpu.matmul %0, %1, %cst {dimension_numbers = #tpu.dot_dimension_numbers<[1], [0], [0], [1], [0, 0, 1, 1], [], []>} : vector<64x4xf32>, vector<4x32xf32>, vector<64x32xf32> -> vector<64x32xf32>
    %c0_3 = arith.constant 0 : index
    %c0_4 = arith.constant 0 : index
    %3 = vector.load %arg4[%c0_3, %c0_4] : memref<1x32xf32, #tpu.memory_space<vmem>>, vector<1x32xf32>
    %4 = vector.broadcast %3 : vector<1x32xf32> to vector<64x32xf32>
    %5 = arith.addf %2, %4 : vector<64x32xf32>
    %c0_5 = arith.constant 0 : index
    %c0_6 = arith.constant 0 : index
    %6 = vector.load %arg6[%c0_5, %c0_6] : memref<64x32xf32, #tpu.memory_space<vmem>>, vector<64x32xf32>
    tpu.vector_store %arg6[%c0_5, %c0_6], %5 {strides = array<i32>} : memref<64x32xf32, #tpu.memory_space<vmem>>, vector<64x32xf32>,
    %c0_7 = arith.constant 0 : index
    %c0_8 = arith.constant 0 : index
    %7 = vector.load %arg5[%c0_7, %c0_8] : memref<1x32xf32, #tpu.memory_space<vmem>>, vector<1x32xf32>
    %8 = vector.shape_cast %7 : vector<1x32xf32> to vector<1x32xf32>
    %9 = vector.broadcast %8 : vector<1x32xf32> to vector<8x32xf32>
    %c0_i32 = arith.constant 0 : i32
    %c8_i32 = arith.constant 8 : i32
    %10 = arith.muli %c0_i32, %c8_i32 : i32
    %11 = tpu.assume_multiple %10, 8 : i32
    %12 = arith.index_cast %11 : i32 to index
    %c0_9 = arith.constant 0 : index
    %13 = vector.load %arg6[%12, %c0_9] : memref<64x32xf32, #tpu.memory_space<vmem>>, vector<8x32xf32>
    %c0_10 = arith.constant 0 : index
    %c0_11 = arith.constant 0 : index
    %14 = vector.load %arg3[%c0_10, %c0_11] : memref<32x32xf32, #tpu.memory_space<vmem>>, vector<32x32xf32>
    %cst_12 = arith.constant dense<0.000000e+00> : vector<8x32xf32>
    %15 = tpu.matmul %9, %14, %cst_12 {dimension_numbers = #tpu.dot_dimension_numbers<[1], [0], [0], [1], [0, 0, 1, 1], [], []>} : vector<8x32xf32>, vector<32x32xf32>, vector<8x32xf32> -> vector<8x32xf32>
    %16 = arith.addf %13, %15 : vector<8x32xf32>
    %17 = math.tanh %16 : vector<8x32xf32>
    %18 = arith.index_cast %11 : i32 to index
    %c0_13 = arith.constant 0 : index
    %19 = vector.load %arg6[%18, %c0_13] : memref<64x32xf32, #tpu.memory_space<vmem>>, vector<8x32xf32>
    tpu.vector_store %arg6[%18, %c0_13], %17 {strides = array<i32>} : memref<64x32xf32, #tpu.memory_space<vmem>>, vector<8x32xf32>,
    %c1_i32 = arith.constant 1 : i32
    %c8_i32_14 = arith.constant 8 : i32
    %20 = arith.muli %c1_i32, %c8_i32_14 : i32
    %21 = tpu.assume_multiple %20, 8 : i32
    %22 = arith.index_cast %21 : i32 to index
    %c0_15 = arith.constant 0 : index
    %23 = vector.load %arg6[%22, %c0_15] : memref<64x32xf32, #tpu.memory_space<vmem>>, vector<8x32xf32>
    %c0_16 = arith.constant 0 : index
    %c0_17 = arith.constant 0 : index
    %24 = vector.load %arg3[%c0_16, %c0_17] : memref<32x32xf32, #tpu.memory_space<vmem>>, vector<32x32xf32>
    %cst_18 = arith.constant dense<0.000000e+00> : vector<8x32xf32>
    %25 = tpu.matmul %17, %24, %cst_18 {dimension_numbers = #tpu.dot_dimension_numbers<[1], [0], [0], [1], [0, 0, 1, 1], [], []>} : vector<8x32xf32>, vector<32x32xf32>, vector<8x32xf32> -> vector<8x32xf32>
    %26 = arith.addf %23, %25 : vector<8x32xf32>
    %27 = math.tanh %26 : vector<8x32xf32>
    %28 = arith.index_cast %21 : i32 to index
    %c0_19 = arith.constant 0 : index
    %29 = vector.load %arg6[%28, %c0_19] : memref<64x32xf32, #tpu.memory_space<vmem>>, vector<8x32xf32>
    tpu.vector_store %arg6[%28, %c0_19], %27 {strides = array<i32>} : memref<64x32xf32, #tpu.memory_space<vmem>>, vector<8x32xf32>,
    %c2_i32 = arith.constant 2 : i32
    %c8_i32_20 = arith.constant 8 : i32
    %30 = arith.muli %c2_i32, %c8_i32_20 : i32
    %31 = tpu.assume_multiple %30, 8 : i32
    %32 = arith.index_cast %31 : i32 to index
    %c0_21 = arith.constant 0 : index
    %33 = vector.load %arg6[%32, %c0_21] : memref<64x32xf32, #tpu.memory_space<vmem>>, vector<8x32xf32>
    %c0_22 = arith.constant 0 : index
    %c0_23 = arith.constant 0 : index
    %34 = vector.load %arg3[%c0_22, %c0_23] : memref<32x32xf32, #tpu.memory_space<vmem>>, vector<32x32xf32>
    %cst_24 = arith.constant dense<0.000000e+00> : vector<8x32xf32>
    %35 = tpu.matmul %27, %34, %cst_24 {dimension_numbers = #tpu.dot_dimension_numbers<[1], [0], [0], [1], [0, 0, 1, 1], [], []>} : vector<8x32xf32>, vector<32x32xf32>, vector<8x32xf32> -> vector<8x32xf32>
    %36 = arith.addf %33, %35 : vector<8x32xf32>
    %37 = math.tanh %36 : vector<8x32xf32>
    %38 = arith.index_cast %31 : i32 to index
    %c0_25 = arith.constant 0 : index
    %39 = vector.load %arg6[%38, %c0_25] : memref<64x32xf32, #tpu.memory_space<vmem>>, vector<8x32xf32>
    tpu.vector_store %arg6[%38, %c0_25], %37 {strides = array<i32>} : memref<64x32xf32, #tpu.memory_space<vmem>>, vector<8x32xf32>,
    %c3_i32 = arith.constant 3 : i32
    %c8_i32_26 = arith.constant 8 : i32
    %40 = arith.muli %c3_i32, %c8_i32_26 : i32
    %41 = tpu.assume_multiple %40, 8 : i32
    %42 = arith.index_cast %41 : i32 to index
    %c0_27 = arith.constant 0 : index
    %43 = vector.load %arg6[%42, %c0_27] : memref<64x32xf32, #tpu.memory_space<vmem>>, vector<8x32xf32>
    %c0_28 = arith.constant 0 : index
    %c0_29 = arith.constant 0 : index
    %44 = vector.load %arg3[%c0_28, %c0_29] : memref<32x32xf32, #tpu.memory_space<vmem>>, vector<32x32xf32>
    %cst_30 = arith.constant dense<0.000000e+00> : vector<8x32xf32>
    %45 = tpu.matmul %37, %44, %cst_30 {dimension_numbers = #tpu.dot_dimension_numbers<[1], [0], [0], [1], [0, 0, 1, 1], [], []>} : vector<8x32xf32>, vector<32x32xf32>, vector<8x32xf32> -> vector<8x32xf32>
    %46 = arith.addf %43, %45 : vector<8x32xf32>
    %47 = math.tanh %46 : vector<8x32xf32>
    %48 = arith.index_cast %41 : i32 to index
    %c0_31 = arith.constant 0 : index
    %49 = vector.load %arg6[%48, %c0_31] : memref<64x32xf32, #tpu.memory_space<vmem>>, vector<8x32xf32>
    tpu.vector_store %arg6[%48, %c0_31], %47 {strides = array<i32>} : memref<64x32xf32, #tpu.memory_space<vmem>>, vector<8x32xf32>,
    %c4_i32 = arith.constant 4 : i32
    %c8_i32_32 = arith.constant 8 : i32
    %50 = arith.muli %c4_i32, %c8_i32_32 : i32
    %51 = tpu.assume_multiple %50, 8 : i32
    %52 = arith.index_cast %51 : i32 to index
    %c0_33 = arith.constant 0 : index
    %53 = vector.load %arg6[%52, %c0_33] : memref<64x32xf32, #tpu.memory_space<vmem>>, vector<8x32xf32>
    %c0_34 = arith.constant 0 : index
    %c0_35 = arith.constant 0 : index
    %54 = vector.load %arg3[%c0_34, %c0_35] : memref<32x32xf32, #tpu.memory_space<vmem>>, vector<32x32xf32>
    %cst_36 = arith.constant dense<0.000000e+00> : vector<8x32xf32>
    %55 = tpu.matmul %47, %54, %cst_36 {dimension_numbers = #tpu.dot_dimension_numbers<[1], [0], [0], [1], [0, 0, 1, 1], [], []>} : vector<8x32xf32>, vector<32x32xf32>, vector<8x32xf32> -> vector<8x32xf32>
    %56 = arith.addf %53, %55 : vector<8x32xf32>
    %57 = math.tanh %56 : vector<8x32xf32>
    %58 = arith.index_cast %51 : i32 to index
    %c0_37 = arith.constant 0 : index
    %59 = vector.load %arg6[%58, %c0_37] : memref<64x32xf32, #tpu.memory_space<vmem>>, vector<8x32xf32>
    tpu.vector_store %arg6[%58, %c0_37], %57 {strides = array<i32>} : memref<64x32xf32, #tpu.memory_space<vmem>>, vector<8x32xf32>,
    %c5_i32 = arith.constant 5 : i32
    %c8_i32_38 = arith.constant 8 : i32
    %60 = arith.muli %c5_i32, %c8_i32_38 : i32
    %61 = tpu.assume_multiple %60, 8 : i32
    %62 = arith.index_cast %61 : i32 to index
    %c0_39 = arith.constant 0 : index
    %63 = vector.load %arg6[%62, %c0_39] : memref<64x32xf32, #tpu.memory_space<vmem>>, vector<8x32xf32>
    %c0_40 = arith.constant 0 : index
    %c0_41 = arith.constant 0 : index
    %64 = vector.load %arg3[%c0_40, %c0_41] : memref<32x32xf32, #tpu.memory_space<vmem>>, vector<32x32xf32>
    %cst_42 = arith.constant dense<0.000000e+00> : vector<8x32xf32>
    %65 = tpu.matmul %57, %64, %cst_42 {dimension_numbers = #tpu.dot_dimension_numbers<[1], [0], [0], [1], [0, 0, 1, 1], [], []>} : vector<8x32xf32>, vector<32x32xf32>, vector<8x32xf32> -> vector<8x32xf32>
    %66 = arith.addf %63, %65 : vector<8x32xf32>
    %67 = math.tanh %66 : vector<8x32xf32>
    %68 = arith.index_cast %61 : i32 to index
    %c0_43 = arith.constant 0 : index
    %69 = vector.load %arg6[%68, %c0_43] : memref<64x32xf32, #tpu.memory_space<vmem>>, vector<8x32xf32>
    tpu.vector_store %arg6[%68, %c0_43], %67 {strides = array<i32>} : memref<64x32xf32, #tpu.memory_space<vmem>>, vector<8x32xf32>,
    %c6_i32 = arith.constant 6 : i32
    %c8_i32_44 = arith.constant 8 : i32
    %70 = arith.muli %c6_i32, %c8_i32_44 : i32
    %71 = tpu.assume_multiple %70, 8 : i32
    %72 = arith.index_cast %71 : i32 to index
    %c0_45 = arith.constant 0 : index
    %73 = vector.load %arg6[%72, %c0_45] : memref<64x32xf32, #tpu.memory_space<vmem>>, vector<8x32xf32>
    %c0_46 = arith.constant 0 : index
    %c0_47 = arith.constant 0 : index
    %74 = vector.load %arg3[%c0_46, %c0_47] : memref<32x32xf32, #tpu.memory_space<vmem>>, vector<32x32xf32>
    %cst_48 = arith.constant dense<0.000000e+00> : vector<8x32xf32>
    %75 = tpu.matmul %67, %74, %cst_48 {dimension_numbers = #tpu.dot_dimension_numbers<[1], [0], [0], [1], [0, 0, 1, 1], [], []>} : vector<8x32xf32>, vector<32x32xf32>, vector<8x32xf32> -> vector<8x32xf32>
    %76 = arith.addf %73, %75 : vector<8x32xf32>
    %77 = math.tanh %76 : vector<8x32xf32>
    %78 = arith.index_cast %71 : i32 to index
    %c0_49 = arith.constant 0 : index
    %79 = vector.load %arg6[%78, %c0_49] : memref<64x32xf32, #tpu.memory_space<vmem>>, vector<8x32xf32>
    tpu.vector_store %arg6[%78, %c0_49], %77 {strides = array<i32>} : memref<64x32xf32, #tpu.memory_space<vmem>>, vector<8x32xf32>,
    %c7_i32 = arith.constant 7 : i32
    %c8_i32_50 = arith.constant 8 : i32
    %80 = arith.muli %c7_i32, %c8_i32_50 : i32
    %81 = tpu.assume_multiple %80, 8 : i32
    %82 = arith.index_cast %81 : i32 to index
    %c0_51 = arith.constant 0 : index
    %83 = vector.load %arg6[%82, %c0_51] : memref<64x32xf32, #tpu.memory_space<vmem>>, vector<8x32xf32>
    %c0_52 = arith.constant 0 : index
    %c0_53 = arith.constant 0 : index
    %84 = vector.load %arg3[%c0_52, %c0_53] : memref<32x32xf32, #tpu.memory_space<vmem>>, vector<32x32xf32>
    %cst_54 = arith.constant dense<0.000000e+00> : vector<8x32xf32>
    %85 = tpu.matmul %77, %84, %cst_54 {dimension_numbers = #tpu.dot_dimension_numbers<[1], [0], [0], [1], [0, 0, 1, 1], [], []>} : vector<8x32xf32>, vector<32x32xf32>, vector<8x32xf32> -> vector<8x32xf32>
    %86 = arith.addf %83, %85 : vector<8x32xf32>
    %87 = math.tanh %86 : vector<8x32xf32>
    %88 = arith.index_cast %81 : i32 to index
    %c0_55 = arith.constant 0 : index
    %89 = vector.load %arg6[%88, %c0_55] : memref<64x32xf32, #tpu.memory_space<vmem>>, vector<8x32xf32>
    tpu.vector_store %arg6[%88, %c0_55], %87 {strides = array<i32>} : memref<64x32xf32, #tpu.memory_space<vmem>>, vector<8x32xf32>,
    %c8_i32_56 = arith.constant 8 : i32
    return
  }
  func.func @transform_0(%arg0: i32) -> (i32, i32) {
    %c0_i32 = arith.constant 0 : i32
    %c0_i32_0 = arith.constant 0 : i32
    %c0_i32_1 = arith.constant 0 : i32
    return %c0_i32, %c0_i32_0 : i32, i32
  }
  func.func @transform_1(%arg0: i32) -> (i32, i32) {
    %c0_i32 = arith.constant 0 : i32
    %c0_i32_0 = arith.constant 0 : i32
    %c0_i32_1 = arith.constant 0 : i32
    return %c0_i32, %c0_i32_0 : i32, i32
  }
  func.func @transform_2(%arg0: i32) -> (i32, i32) {
    %c0_i32 = arith.constant 0 : i32
    %c0_i32_0 = arith.constant 0 : i32
    %c0_i32_1 = arith.constant 0 : i32
    return %c0_i32, %c0_i32_0 : i32, i32
  }
  func.func @transform_3(%arg0: i32) -> (i32, i32) {
    %c0_i32 = arith.constant 0 : i32
    %c0_i32_0 = arith.constant 0 : i32
    %c0_i32_1 = arith.constant 0 : i32
    return %c0_i32, %c0_i32_0 : i32, i32
  }
  func.func @transform_4(%arg0: i32) -> (i32, i32) {
    %c0_i32 = arith.constant 0 : i32
    %c0_i32_0 = arith.constant 0 : i32
    %c0_i32_1 = arith.constant 0 : i32
    return %c0_i32, %c0_i32_0 : i32, i32
  }
  func.func @transform_5(%arg0: i32) -> (i32, i32) {
    %c0_i32 = arith.constant 0 : i32
    %c0_i32_0 = arith.constant 0 : i32
    %c0_i32_1 = arith.constant 0 : i32
    return %c0_i32, %c0_i32_0 : i32, i32
  }
}

</mosaic_0001>

<llo_original>
// kernel: tpu_custom_call.1
$region0: #{tpu_custom_call.1}
  #allocation0 [shape = 'u32[]', space=smem, size = 0x4, offset = 0x4, fixed_abs, tag = 'smem constant byte address 0x4 - core index']
  #allocation1 [shape = 'u32[72,128]{1,0:T(1,128)}', space=vmem, size = 0x9000, scoped, tag = 'internal scratch']
  %s0 = inlined_call_operand.vmem [shape: f32[64,4], index: 0, kind: input, shape index: {}]
  %s1 = inlined_call_operand.vmem [shape: f32[4,32], index: 1, kind: input, shape index: {}]
  %s2 = inlined_call_operand.vmem [shape: f32[32,32], index: 2, kind: input, shape index: {}]
  %s3 = inlined_call_operand.vmem [shape: f32[1,32], index: 3, kind: input, shape index: {}]
  %s4 = inlined_call_operand.vmem [shape: f32[1,32], index: 4, kind: input, shape index: {}]
  %s5 = inlined_call_operand.vmem [shape: f32[64,32], index: 5, kind: output, shape index: {}]
  %s6 = sld [smem:[#allocation0]]
  $region30: #{tpu_custom_call.1} parent=0
    _
  %s8 = ssub.s32 1, %s6
  %s9 = scalar_select 0, %s8, %s6
  // Predicated region
  $region2: #{tpu_custom_call.1} parent=0 // pred_check
    _
  $region3: #{tpu_custom_call.1} parent=0 // pred_check_branch
    %11 = sbr.rel (0) target = $region5
  $region4: #{tpu_custom_call.1} parent=0 // pred_region
    _
  $region5: #{tpu_custom_call.1} parent=0 // pred_fallthru
    _
  // Predicated region
  $region6: #{tpu_custom_call.1} parent=0 // pred_check
    _
  $region7: #{tpu_custom_call.1} parent=0 // pred_check_branch
    %13 = sbr.rel (0) target = $region9
  $region8: #{tpu_custom_call.1} parent=0 // pred_region
    _
  $region9: #{tpu_custom_call.1} parent=0 // pred_fallthru
    _
  // Predicated region
  $region10: #{tpu_custom_call.1} parent=0 // pred_check
    _
  $region11: #{tpu_custom_call.1} parent=0 // pred_check_branch
    %15 = sbr.rel (0) target = $region13
  $region12: #{tpu_custom_call.1} parent=0 // pred_region
    _
  $region13: #{tpu_custom_call.1} parent=0 // pred_fallthru
    _
  // Predicated region
  $region14: #{tpu_custom_call.1} parent=0 // pred_check
    _
  $region15: #{tpu_custom_call.1} parent=0 // pred_check_branch
    %17 = sbr.rel (0) target = $region17
  $region16: #{tpu_custom_call.1} parent=0 // pred_region
    _
  $region17: #{tpu_custom_call.1} parent=0 // pred_fallthru
    _
  // Predicated region
  $region18: #{tpu_custom_call.1} parent=0 // pred_check
    _
  $region19: #{tpu_custom_call.1} parent=0 // pred_check_branch
    %19 = sbr.rel (0) target = $region21
  $region20: #{tpu_custom_call.1} parent=0 // pred_region
    _
  $region21: #{tpu_custom_call.1} parent=0 // pred_fallthru
    _
  %v20 = vld [vmem:[%s0] sm:$0xff]
  %v21 = vld [vmem:[%s0 + $0x8] sm:$0xff]
  %v22 = vld [vmem:[%s0 + $0x10] sm:$0xff]
  %v23 = vld [vmem:[%s0 + $0x18] sm:$0xff]
  %v24 = vld [vmem:[%s0 + $0x20] sm:$0xff]
  %v25 = vld [vmem:[%s0 + $0x28] sm:$0xff]
  %v26 = vld [vmem:[%s0 + $0x30] sm:$0xff]
  %v27 = vld [vmem:[%s0 + $0x38] sm:$0xff]
  %v28 = vld [vmem:[%s1] sm:$0xf]
  %v29 = vld [vmem:[%s3] sm:$0x1]
  %v31 = vperm.slane %v29, 0
  %vm33 = vcmask 31744
  %v35 = vsel %vm33, %v20, 0
  %v38 = vsel %vm33, %v21, 0
  %v41 = vsel %vm33, %v22, 0
  %v44 = vsel %vm33, %v23, 0
  %v47 = vsel %vm33, %v24, 0
  %v50 = vsel %vm33, %v25, 0
  %v53 = vsel %vm33, %v26, 0
  %v56 = vsel %vm33, %v27, 0
  %vm58 = vcmask 1043456
  %v60 = vsel %vm58, %v28, 0
  %62 = vmatpush.msra.mxu0 0.0
  %63 = vmatpush.msra.mxu0 0.0
  %64 = vmatpush.msra.mxu0 0.0
  %65 = vmatpush.msra.mxu0 0.0
  %66 = vmatpush.msra.mxu0 0.0
  %67 = vmatpush.msra.mxu0 0.0
  %68 = vmatpush.msra.mxu0 0.0
  %69 = vmatpush.msra.mxu0 0.0
  %70 = vmatpush.msra.mxu0 0.0
  %71 = vmatpush.msra.mxu0 0.0
  %72 = vmatpush.msra.mxu0 0.0
  %73 = vmatpush.msra.mxu0 0.0
  %74 = vmatpush.msra.mxu0 0.0
  %75 = vmatpush.msra.mxu0 0.0
  %76 = vmatpush.msra.mxu0 0.0
  %77 = vmatpush.msra.mxu0 %v60
  %78 = vmatmul.f32.gmra.mxu0 %v35
  %v79 = vpop.f32.mrf.mxu0
  %v80 = vadd.f32 %v31, %v79
  %81 = vmatmul.f32.gmra.mxu0 %v38
  %v82 = vpop.f32.mrf.mxu0
  %v83 = vadd.f32 %v31, %v82
  %84 = vmatmul.f32.gmra.mxu0 %v41
  %v85 = vpop.f32.mrf.mxu0
  %v86 = vadd.f32 %v31, %v85
  %87 = vmatmul.f32.gmra.mxu0 %v44
  %v88 = vpop.f32.mrf.mxu0
  %v89 = vadd.f32 %v31, %v88
  %90 = vmatmul.f32.gmra.mxu0 %v47
  %v91 = vpop.f32.mrf.mxu0
  %v92 = vadd.f32 %v31, %v91
  %93 = vmatmul.f32.gmra.mxu0 %v50
  %v94 = vpop.f32.mrf.mxu0
  %v95 = vadd.f32 %v31, %v94
  %96 = vmatmul.f32.gmra.mxu0 %v53
  %v97 = vpop.f32.mrf.mxu0
  %v98 = vadd.f32 %v31, %v97
  %99 = vmatmul.f32.gmra.mxu0 %v56
  %v100 = vpop.f32.mrf.mxu0
  %v101 = vadd.f32 %v31, %v100
  %102 = vdwg.mxu0
  %vm103 = vcmask 261120
  %104 = vst.msk [vmem:[%s5] sm:$0xff] %vm103, %v80
  %105 = vst.msk [vmem:[%s5 + $0x8] sm:$0xff] %vm103, %v83
  %106 = vst.msk [vmem:[%s5 + $0x10] sm:$0xff] %vm103, %v86
  %107 = vst.msk [vmem:[%s5 + $0x18] sm:$0xff] %vm103, %v89
  %108 = vst.msk [vmem:[%s5 + $0x20] sm:$0xff] %vm103, %v92
  %109 = vst.msk [vmem:[%s5 + $0x28] sm:$0xff] %vm103, %v95
  %110 = vst.msk [vmem:[%s5 + $0x30] sm:$0xff] %vm103, %v98
  %111 = vst.msk [vmem:[%s5 + $0x38] sm:$0xff] %vm103, %v101
  %v112 = vld [vmem:[%s4] sm:$0x1]
  %v114 = vperm.slane %v112, 0
  %v115 = vld [vmem:[%s5] sm:$0xff]
  %v116 = vld [vmem:[%s2] sm:$0xff]
  %v117 = vld [vmem:[%s2 + $0x8] sm:$0xff]
  %v118 = vld [vmem:[%s2 + $0x10] sm:$0xff]
  %v119 = vld [vmem:[%s2 + $0x18] sm:$0xff]
  %v120 = vsel %vm103, %v114, 0
  %122 = vmatpush.msra.mxu0 0.0
  %123 = vmatpush.msra.mxu0 0.0
  %124 = vmatpush.msra.mxu0 0.0
  %125 = vmatpush.msra.mxu0 0.0
  %126 = vmatpush.msra.mxu0 0.0
  %127 = vmatpush.msra.mxu0 0.0
  %128 = vmatpush.msra.mxu0 0.0
  %129 = vmatpush.msra.mxu0 0.0
  %130 = vmatpush.msra.mxu0 0.0
  %131 = vmatpush.msra.mxu0 0.0
  %132 = vmatpush.msra.mxu0 0.0
  %133 = vmatpush.msra.mxu0 0.0
  %134 = vmatpush.msra.mxu0 %v119
  %135 = vmatpush.msra.mxu0 %v118
  %136 = vmatpush.msra.mxu0 %v117
  %137 = vmatpush.msra.mxu0 %v116
  %138 = vmatmul.f32.gmra.mxu0 %v120
  %v139 = vpop.f32.mrf.mxu0
  %v140 = vadd.f32 0.0, %v139
  %141 = vdwg.mxu0
  %v142 = vadd.f32 %v115, %v140
  %v143 = vtanh.pop %v142
  %144 = vst.msk [vmem:[%s5] sm:$0xff] %vm103, %v143
  %s145 = scalar_lea.vmem %s5, 8
  %v146 = vld [vmem:[%s145] sm:$0xff]
  %v147 = vld [vmem:[%s2] sm:$0xff]
  %v148 = vld [vmem:[%s2 + $0x8] sm:$0xff]
  %v149 = vld [vmem:[%s2 + $0x10] sm:$0xff]
  %v150 = vld [vmem:[%s2 + $0x18] sm:$0xff]
  %v152 = vsel %vm103, %v143, 0
  %154 = vmatpush.msra.mxu0 0.0
  %155 = vmatpush.msra.mxu0 0.0
  %156 = vmatpush.msra.mxu0 0.0
  %157 = vmatpush.msra.mxu0 0.0
  %158 = vmatpush.msra.mxu0 0.0
  %159 = vmatpush.msra.mxu0 0.0
  %160 = vmatpush.msra.mxu0 0.0
  %161 = vmatpush.msra.mxu0 0.0
  %162 = vmatpush.msra.mxu0 0.0
  %163 = vmatpush.msra.mxu0 0.0
  %164 = vmatpush.msra.mxu0 0.0
  %165 = vmatpush.msra.mxu0 0.0
  %166 = vmatpush.msra.mxu0 %v150
  %167 = vmatpush.msra.mxu0 %v149
  %168 = vmatpush.msra.mxu0 %v148
  %169 = vmatpush.msra.mxu0 %v147
  %170 = vmatmul.f32.gmra.mxu0 %v152
  %v171 = vpop.f32.mrf.mxu0
  %v172 = vadd.f32 0.0, %v171
  %173 = vdwg.mxu0
  %v174 = vadd.f32 %v146, %v172
  %v175 = vtanh.pop %v174
  %176 = vst.msk [vmem:[%s145] sm:$0xff] %vm103, %v175
  %s177 = scalar_lea.vmem %s5, 16
  %v178 = vld [vmem:[%s177] sm:$0xff]
  %v179 = vld [vmem:[%s2] sm:$0xff]
  %v180 = vld [vmem:[%s2 + $0x8] sm:$0xff]
  %v181 = vld [vmem:[%s2 + $0x10] sm:$0xff]
  %v182 = vld [vmem:[%s2 + $0x18] sm:$0xff]
  %v184 = vsel %vm103, %v175, 0
  %186 = vmatpush.msra.mxu0 0.0
  %187 = vmatpush.msra.mxu0 0.0
  %188 = vmatpush.msra.mxu0 0.0
  %189 = vmatpush.msra.mxu0 0.0
  %190 = vmatpush.msra.mxu0 0.0
  %191 = vmatpush.msra.mxu0 0.0
  %192 = vmatpush.msra.mxu0 0.0
  %193 = vmatpush.msra.mxu0 0.0
  %194 = vmatpush.msra.mxu0 0.0
  %195 = vmatpush.msra.mxu0 0.0
  %196 = vmatpush.msra.mxu0 0.0
  %197 = vmatpush.msra.mxu0 0.0
  %198 = vmatpush.msra.mxu0 %v182
  %199 = vmatpush.msra.mxu0 %v181
  %200 = vmatpush.msra.mxu0 %v180
  %201 = vmatpush.msra.mxu0 %v179
  %202 = vmatmul.f32.gmra.mxu0 %v184
  %v203 = vpop.f32.mrf.mxu0
  %v204 = vadd.f32 0.0, %v203
  %205 = vdwg.mxu0
  %v206 = vadd.f32 %v178, %v204
  %v207 = vtanh.pop %v206
  %208 = vst.msk [vmem:[%s177] sm:$0xff] %vm103, %v207
  %s209 = scalar_lea.vmem %s5, 24
  %v210 = vld [vmem:[%s209] sm:$0xff]
  %v211 = vld [vmem:[%s2] sm:$0xff]
  %v212 = vld [vmem:[%s2 + $0x8] sm:$0xff]
  %v213 = vld [vmem:[%s2 + $0x10] sm:$0xff]
  %v214 = vld [vmem:[%s2 + $0x18] sm:$0xff]
  %v216 = vsel %vm103, %v207, 0
  %218 = vmatpush.msra.mxu0 0.0
  %219 = vmatpush.msra.mxu0 0.0
  %220 = vmatpush.msra.mxu0 0.0
  %221 = vmatpush.msra.mxu0 0.0
  %222 = vmatpush.msra.mxu0 0.0
  %223 = vmatpush.msra.mxu0 0.0
  %224 = vmatpush.msra.mxu0 0.0
  %225 = vmatpush.msra.mxu0 0.0
  %226 = vmatpush.msra.mxu0 0.0
  %227 = vmatpush.msra.mxu0 0.0
  %228 = vmatpush.msra.mxu0 0.0
  %229 = vmatpush.msra.mxu0 0.0
  %230 = vmatpush.msra.mxu0 %v214
  %231 = vmatpush.msra.mxu0 %v213
  %232 = vmatpush.msra.mxu0 %v212
  %233 = vmatpush.msra.mxu0 %v211
  %234 = vmatmul.f32.gmra.mxu0 %v216
  %v235 = vpop.f32.mrf.mxu0
  %v236 = vadd.f32 0.0, %v235
  %237 = vdwg.mxu0
  %v238 = vadd.f32 %v210, %v236
  %v239 = vtanh.pop %v238
  %240 = vst.msk [vmem:[%s209] sm:$0xff] %vm103, %v239
  %s241 = scalar_lea.vmem %s5, 32
  %v242 = vld [vmem:[%s241] sm:$0xff]
  %v243 = vld [vmem:[%s2] sm:$0xff]
  %v244 = vld [vmem:[%s2 + $0x8] sm:$0xff]
  %v245 = vld [vmem:[%s2 + $0x10] sm:$0xff]
  %v246 = vld [vmem:[%s2 + $0x18] sm:$0xff]
  %v248 = vsel %vm103, %v239, 0
  %250 = vmatpush.msra.mxu0 0.0
  %251 = vmatpush.msra.mxu0 0.0
  %252 = vmatpush.msra.mxu0 0.0
  %253 = vmatpush.msra.mxu0 0.0
  %254 = vmatpush.msra.mxu0 0.0
  %255 = vmatpush.msra.mxu0 0.0
  %256 = vmatpush.msra.mxu0 0.0
  %257 = vmatpush.msra.mxu0 0.0
  %258 = vmatpush.msra.mxu0 0.0
  %259 = vmatpush.msra.mxu0 0.0
  %260 = vmatpush.msra.mxu0 0.0
  %261 = vmatpush.msra.mxu0 0.0
  %262 = vmatpush.msra.mxu0 %v246
  %263 = vmatpush.msra.mxu0 %v245
  %264 = vmatpush.msra.mxu0 %v244
  %265 = vmatpush.msra.mxu0 %v243
  %266 = vmatmul.f32.gmra.mxu0 %v248
  %v267 = vpop.f32.mrf.mxu0
  %v268 = vadd.f32 0.0, %v267
  %269 = vdwg.mxu0
  %v270 = vadd.f32 %v242, %v268
  %v271 = vtanh.pop %v270
  %272 = vst.msk [vmem:[%s241] sm:$0xff] %vm103, %v271
  %s273 = scalar_lea.vmem %s5, 40
  %v274 = vld [vmem:[%s273] sm:$0xff]
  %v275 = vld [vmem:[%s2] sm:$0xff]
  %v276 = vld [vmem:[%s2 + $0x8] sm:$0xff]
  %v277 = vld [vmem:[%s2 + $0x10] sm:$0xff]
  %v278 = vld [vmem:[%s2 + $0x18] sm:$0xff]
  %v280 = vsel %vm103, %v271, 0
  %282 = vmatpush.msra.mxu0 0.0
  %283 = vmatpush.msra.mxu0 0.0
  %284 = vmatpush.msra.mxu0 0.0
  %285 = vmatpush.msra.mxu0 0.0
  %286 = vmatpush.msra.mxu0 0.0
  %287 = vmatpush.msra.mxu0 0.0
  %288 = vmatpush.msra.mxu0 0.0
  %289 = vmatpush.msra.mxu0 0.0
  %290 = vmatpush.msra.mxu0 0.0
  %291 = vmatpush.msra.mxu0 0.0
  %292 = vmatpush.msra.mxu0 0.0
  %293 = vmatpush.msra.mxu0 0.0
  %294 = vmatpush.msra.mxu0 %v278
  %295 = vmatpush.msra.mxu0 %v277
  %296 = vmatpush.msra.mxu0 %v276
  %297 = vmatpush.msra.mxu0 %v275
  %298 = vmatmul.f32.gmra.mxu0 %v280
  %v299 = vpop.f32.mrf.mxu0
  %v300 = vadd.f32 0.0, %v299
  %301 = vdwg.mxu0
  %v302 = vadd.f32 %v274, %v300
  %v303 = vtanh.pop %v302
  %304 = vst.msk [vmem:[%s273] sm:$0xff] %vm103, %v303
  %s305 = scalar_lea.vmem %s5, 48
  %v306 = vld [vmem:[%s305] sm:$0xff]
  %v307 = vld [vmem:[%s2] sm:$0xff]
  %v308 = vld [vmem:[%s2 + $0x8] sm:$0xff]
  %v309 = vld [vmem:[%s2 + $0x10] sm:$0xff]
  %v310 = vld [vmem:[%s2 + $0x18] sm:$0xff]
  %v312 = vsel %vm103, %v303, 0
  %314 = vmatpush.msra.mxu0 0.0
  %315 = vmatpush.msra.mxu0 0.0
  %316 = vmatpush.msra.mxu0 0.0
  %317 = vmatpush.msra.mxu0 0.0
  %318 = vmatpush.msra.mxu0 0.0
  %319 = vmatpush.msra.mxu0 0.0
  %320 = vmatpush.msra.mxu0 0.0
  %321 = vmatpush.msra.mxu0 0.0
  %322 = vmatpush.msra.mxu0 0.0
  %323 = vmatpush.msra.mxu0 0.0
  %324 = vmatpush.msra.mxu0 0.0
  %325 = vmatpush.msra.mxu0 0.0
  %326 = vmatpush.msra.mxu0 %v310
  %327 = vmatpush.msra.mxu0 %v309
  %328 = vmatpush.msra.mxu0 %v308
  %329 = vmatpush.msra.mxu0 %v307
  %330 = vmatmul.f32.gmra.mxu0 %v312
  %v331 = vpop.f32.mrf.mxu0
  %v332 = vadd.f32 0.0, %v331
  %333 = vdwg.mxu0
  %v334 = vadd.f32 %v306, %v332
  %v335 = vtanh.pop %v334
  %336 = vst.msk [vmem:[%s305] sm:$0xff] %vm103, %v335
  %s337 = scalar_lea.vmem %s5, 56
  %v338 = vld [vmem:[%s337] sm:$0xff]
  %v339 = vld [vmem:[%s2] sm:$0xff]
  %v340 = vld [vmem:[%s2 + $0x8] sm:$0xff]
  %v341 = vld [vmem:[%s2 + $0x10] sm:$0xff]
  %v342 = vld [vmem:[%s2 + $0x18] sm:$0xff]
  %v344 = vsel %vm103, %v335, 0
  %346 = vmatpush.msra.mxu0 0.0
  %347 = vmatpush.msra.mxu0 0.0
  %348 = vmatpush.msra.mxu0 0.0
  %349 = vmatpush.msra.mxu0 0.0
  %350 = vmatpush.msra.mxu0 0.0
  %351 = vmatpush.msra.mxu0 0.0
  %352 = vmatpush.msra.mxu0 0.0
  %353 = vmatpush.msra.mxu0 0.0
  %354 = vmatpush.msra.mxu0 0.0
  %355 = vmatpush.msra.mxu0 0.0
  %356 = vmatpush.msra.mxu0 0.0
  %357 = vmatpush.msra.mxu0 0.0
  %358 = vmatpush.msra.mxu0 %v342
  %359 = vmatpush.msra.mxu0 %v341
  %360 = vmatpush.msra.mxu0 %v340
  %361 = vmatpush.msra.mxu0 %v339
  %362 = vmatmul.f32.gmra.mxu0 %v344
  %v363 = vpop.f32.mrf.mxu0
  %v364 = vadd.f32 0.0, %v363
  %365 = vdwg.mxu0
  %v366 = vadd.f32 %v338, %v364
  %v367 = vtanh.pop %v366
  %368 = vst.msk [vmem:[%s337] sm:$0xff] %vm103, %v367
  // Predicated region
  $region22: #{tpu_custom_call.1} parent=0 // pred_check
    _
  $region23: #{tpu_custom_call.1} parent=0 // pred_check_branch
    %370 = sbr.rel (0) target = $region25
  $region24: #{tpu_custom_call.1} parent=0 // pred_region
    _
  $region25: #{tpu_custom_call.1} parent=0 // pred_fallthru
    _
  // Predicated region
  $region26: #{tpu_custom_call.1} parent=0 // pred_check
    _
  $region27: #{tpu_custom_call.1} parent=0 // pred_check_branch
    %372 = sbr.rel (0) target = $region29
  $region28: #{tpu_custom_call.1} parent=0 // pred_region
    _
  $region29: #{tpu_custom_call.1} parent=0 // pred_fallthru
    _

</llo_original>
